<compile_context>
chip_gen: v7x
topology: tpu7x:2x2x1
jax: 0.10.0
libtpu: 0.0.40
codegen_flags: <defaults>
</compile_context>

<pallas_src>
import jax
import jax.numpy as jnp
from jax.experimental import pallas as pl
from jax.experimental.pallas import tpu as pltpu

VOCAB = 10
EMB_DIM = 10
IN_DIM = 20      # concat of two 10-dim embeddings
HIDDEN = 20
OUT_DIM = 10


def rnn_dense_kernel(x_ref, wih_ref, whh_ref, b_ref, wd_ref, bd_ref,
                     out_ref, h_all_ref):
    """Full-sequence RNN + dense head in a single kernel invocation.

    x_ref     : (B, T, 20)  embedded + concatenated inputs (batch-first)
    wih_ref   : (20, 20)    W_ih^T  (so x @ W_ih^T == x @ wih_ref)
    whh_ref   : (20, 20)    W_hh^T
    b_ref     : (1, 20)     b_ih + b_hh (folded once)
    wd_ref    : (20, 10)    W_dense^T
    bd_ref    : (1, 10)     b_dense
    out_ref   : (B, T, 10)  logits
    h_all_ref : (B, T, 20)  VMEM scratch holding every hidden state
    """
    B, T, C = x_ref.shape
    H = whh_ref.shape[0]

    # ---- input projection for ALL time steps: one MXU op, off the serial path ----
    x_flat = x_ref[...].reshape(B * T, C)                        # (B*T, 20)
    x_proj = (jnp.dot(x_flat, wih_ref[...],
                      preferred_element_type=jnp.float32)
              + b_ref[...])                                      # (B*T, H)
    x_proj = x_proj.reshape(B, T, H)

    whh = whh_ref[...]                                           # keep vreg-resident

    # ---- recurrence: only h @ W_hh^T is serial; statically unrolled (T is small) ----
    h = jnp.tanh(x_proj[:, 0, :])                                # h0 == 0 (PyTorch default)
    h_all_ref[:, 0, :] = h
    for t in range(1, T):
        h = jnp.tanh(x_proj[:, t, :]
                     + jnp.dot(h, whh, preferred_element_type=jnp.float32))
        h_all_ref[:, t, :] = h

    # ---- dense head over the whole sequence: one MXU op + a single output store ----
    h_all = h_all_ref[...].reshape(B * T, H)
    logits = (jnp.dot(h_all, wd_ref[...],
                      preferred_element_type=jnp.float32)
              + bd_ref[...])                                     # (B*T, 10)
    out_ref[...] = logits.reshape(B, T, out_ref.shape[-1])


def rnn_dense_pallas(x_btc, params):
    """x_btc: (B, T, 20) float32 -> logits (B, T, 10) float32 (batch-first, no transposes)."""
    B, T, C = x_btc.shape
    assert C == IN_DIM

    wih_t = params["w_ih"].T                                     # (20, 20)
    whh_t = params["w_hh"].T                                     # (20, 20)
    b_comb = (params["b_ih"] + params["b_hh"]).reshape(1, HIDDEN)
    wd_t = params["w_dense"].T                                   # (20, 10)
    bd = params["b_dense"].reshape(1, OUT_DIM)                   # (1, 10)

    vmem = pl.BlockSpec(memory_space=pltpu.MemorySpace.VMEM)     # full arrays, VMEM-resident
    return pl.pallas_call(
        rnn_dense_kernel,
        out_shape=jax.ShapeDtypeStruct((B, T, OUT_DIM), jnp.float32),
        in_specs=[vmem] * 6,
        out_specs=vmem,
        scratch_shapes=[pltpu.VMEM((B, T, HIDDEN), jnp.float32)],
        # NOTE(v7x): the recurrence is serial in T; a second TensorCore would only help
        # with a batch-parallel leading grid axis, which is pointless at B=2.
    )(x_btc, wih_t, whh_t, b_comb, wd_t, bd)


def init_params(key):
    """Deterministic synthetic parameters matching the PyTorch module shapes."""
    ks = jax.random.split(key, 7)
    s = 1.0 / jnp.sqrt(jnp.float32(HIDDEN))
    return {
        "embed":   jax.random.normal(ks[0], (VOCAB, EMB_DIM), jnp.float32),
        # nn.RNN(20, 20): weight_ih_l0 (20,20), weight_hh_l0 (20,20), biases (20,)
        "w_ih":    jax.random.uniform(ks[1], (HIDDEN, IN_DIM), jnp.float32, -s, s),
        "w_hh":    jax.random.uniform(ks[2], (HIDDEN, HIDDEN), jnp.float32, -s, s),
        "b_ih":    jax.random.uniform(ks[3], (HIDDEN,), jnp.float32, -s, s),
        "b_hh":    jax.random.uniform(ks[4], (HIDDEN,), jnp.float32, -s, s),
        # nn.Linear(20, 10): weight (10,20), bias (10,)
        "w_dense": jax.random.uniform(ks[5], (OUT_DIM, HIDDEN), jnp.float32, -s, s),
        "b_dense": jax.random.uniform(ks[6], (OUT_DIM,), jnp.float32, -s, s),
    }


@jax.jit
def model_forward(num1, num2, params):
    """Mirrors myPTRNNModel.forward: embed both, concat on feature dim, RNN, dense."""
    x1 = jnp.take(params["embed"], num1, axis=0)   # (B, T, 10)
    x2 = jnp.take(params["embed"], num2, axis=0)   # (B, T, 10)
    x = jnp.concatenate([x1, x2], axis=2)          # (B, T, 20), batch-first
    return rnn_dense_pallas(x, params)             # (B, T, 10)


def model_forward_ref(num1, num2, params):
    """Pure-JAX reference (lax.scan) for correctness checking."""
    x1 = jnp.take(params["embed"], num1, axis=0)
    x2 = jnp.take(params["embed"], num2, axis=0)
    x = jnp.concatenate([x1, x2], axis=2)          # (B, T, 20)
    B = x.shape[0]

    def step(h, x_t):
        h_new = jnp.tanh(x_t @ params["w_ih"].T + params["b_ih"]
                         + h @ params["w_hh"].T + params["b_hh"])
        return h_new, h_new

    h0 = jnp.zeros((B, HIDDEN), jnp.float32)
    _, hs = jax.lax.scan(step, h0, jnp.transpose(x, (1, 0, 2)))   # (T, B, 20)
    out = jnp.transpose(hs, (1, 0, 2))                            # (B, T, 20)
    return out @ params["w_dense"].T + params["b_dense"]          # (B, T, 10)


if __name__ == "__main__":
    key = jax.random.PRNGKey(0)
    k_p, k_n1, k_n2 = jax.random.split(key, 3)

    params = init_params(k_p)

    B, T = 2, 8
    num1 = jax.random.randint(k_n1, (B, T), 0, VOCAB, dtype=jnp.int32)
    num2 = jax.random.randint(k_n2, (B, T), 0, VOCAB, dtype=jnp.int32)

    logits = model_forward(num1, num2, params)
    jax.block_until_ready(logits)

    ref = model_forward_ref(num1, num2, params)
    assert logits.shape == (B, T, OUT_DIM)
    assert jnp.allclose(logits, ref, atol=1e-5, rtol=1e-5), "mismatch vs reference"

    print("KERNEL_OK")
</pallas_src>

<mosaic_0001>
module attributes {stable_mosaic.version = 11 : i64} {
  func.func @rnn_dense_kernel(%arg0: memref<2x8x20xf32, #tpu.memory_space<vmem>>, %arg1: memref<20x20xf32, #tpu.memory_space<vmem>>, %arg2: memref<20x20xf32, #tpu.memory_space<vmem>>, %arg3: memref<1x20xf32, #tpu.memory_space<vmem>>, %arg4: memref<20x10xf32, #tpu.memory_space<vmem>>, %arg5: memref<1x10xf32, #tpu.memory_space<vmem>>, %arg6: memref<2x8x10xf32, #tpu.memory_space<vmem>>, %arg7: memref<2x8x20xf32, #tpu.memory_space<vmem>>) attributes {dimension_semantics = [], scalar_prefetch = 0 : i64, scratch_operands = 1 : i64, tpu.core_type = #tpu.core_type<tc>} {
    %c0 = arith.constant 0 : index
    %c0_0 = arith.constant 0 : index
    %c0_1 = arith.constant 0 : index
    %0 = vector.load %arg0[%c0, %c0_0, %c0_1] : memref<2x8x20xf32, #tpu.memory_space<vmem>>, vector<2x8x20xf32>
    %1 = vector.shape_cast %0 : vector<2x8x20xf32> to vector<16x20xf32>
    %c0_2 = arith.constant 0 : index
    %c0_3 = arith.constant 0 : index
    %2 = vector.load %arg1[%c0_2, %c0_3] : memref<20x20xf32, #tpu.memory_space<vmem>>, vector<20x20xf32>
    %cst = arith.constant dense<0.000000e+00> : vector<16x20xf32>
    %3 = tpu.matmul %1, %2, %cst {dimension_numbers = #tpu.dot_dimension_numbers<[1], [0], [0], [1], [0, 0, 1, 1], [], []>} : vector<16x20xf32>, vector<20x20xf32>, vector<16x20xf32> -> vector<16x20xf32>
    %c0_4 = arith.constant 0 : index
    %c0_5 = arith.constant 0 : index
    %4 = vector.load %arg3[%c0_4, %c0_5] : memref<1x20xf32, #tpu.memory_space<vmem>>, vector<1x20xf32>
    %5 = vector.broadcast %4 : vector<1x20xf32> to vector<16x20xf32>
    %6 = arith.addf %3, %5 : vector<16x20xf32>
    %7 = vector.shape_cast %6 : vector<16x20xf32> to vector<2x8x20xf32>
    %c0_6 = arith.constant 0 : index
    %c0_7 = arith.constant 0 : index
    %8 = vector.load %arg2[%c0_6, %c0_7] : memref<20x20xf32, #tpu.memory_space<vmem>>, vector<20x20xf32>
    %9 = vector.extract_strided_slice %7 {offsets = [0, 0, 0], sizes = [2, 1, 20], strides = [1, 1, 1]} : vector<2x8x20xf32> to vector<2x1x20xf32>
    %10 = vector.shape_cast %9 : vector<2x1x20xf32> to vector<2x20xf32>
    %11 = math.tanh %10 : vector<2x20xf32>
    %c0_8 = arith.constant 0 : index
    %c0_9 = arith.constant 0 : index
    %c0_10 = arith.constant 0 : index
    %12 = vector.load %arg7[%c0_8, %c0_9, %c0_10] : memref<2x8x20xf32, #tpu.memory_space<vmem>>, vector<2x1x20xf32>
    %13 = vector.shape_cast %12 : vector<2x1x20xf32> to vector<2x20xf32>
    %14 = vector.shape_cast %11 : vector<2x20xf32> to vector<2x1x20xf32>
    tpu.vector_store %arg7[%c0_8, %c0_9, %c0_10], %14 {strides = array<i32>} : memref<2x8x20xf32, #tpu.memory_space<vmem>>, vector<2x1x20xf32>,
    %15 = vector.extract_strided_slice %7 {offsets = [0, 1, 0], sizes = [2, 1, 20], strides = [1, 1, 1]} : vector<2x8x20xf32> to vector<2x1x20xf32>
    %16 = vector.shape_cast %15 : vector<2x1x20xf32> to vector<2x20xf32>
    %cst_11 = arith.constant dense<0.000000e+00> : vector<2x20xf32>
    %17 = tpu.matmul %11, %8, %cst_11 {dimension_numbers = #tpu.dot_dimension_numbers<[1], [0], [0], [1], [0, 0, 1, 1], [], []>} : vector<2x20xf32>, vector<20x20xf32>, vector<2x20xf32> -> vector<2x20xf32>
    %18 = arith.addf %16, %17 : vector<2x20xf32>
    %19 = math.tanh %18 : vector<2x20xf32>
    %c0_12 = arith.constant 0 : index
    %c1 = arith.constant 1 : index
    %c0_13 = arith.constant 0 : index
    %20 = vector.load %arg7[%c0_12, %c1, %c0_13] : memref<2x8x20xf32, #tpu.memory_space<vmem>>, vector<2x1x20xf32>
    %21 = vector.shape_cast %20 : vector<2x1x20xf32> to vector<2x20xf32>
    %22 = vector.shape_cast %19 : vector<2x20xf32> to vector<2x1x20xf32>
    tpu.vector_store %arg7[%c0_12, %c1, %c0_13], %22 {strides = array<i32>} : memref<2x8x20xf32, #tpu.memory_space<vmem>>, vector<2x1x20xf32>,
    %23 = vector.extract_strided_slice %7 {offsets = [0, 2, 0], sizes = [2, 1, 20], strides = [1, 1, 1]} : vector<2x8x20xf32> to vector<2x1x20xf32>
    %24 = vector.shape_cast %23 : vector<2x1x20xf32> to vector<2x20xf32>
    %cst_14 = arith.constant dense<0.000000e+00> : vector<2x20xf32>
    %25 = tpu.matmul %19, %8, %cst_14 {dimension_numbers = #tpu.dot_dimension_numbers<[1], [0], [0], [1], [0, 0, 1, 1], [], []>} : vector<2x20xf32>, vector<20x20xf32>, vector<2x20xf32> -> vector<2x20xf32>
    %26 = arith.addf %24, %25 : vector<2x20xf32>
    %27 = math.tanh %26 : vector<2x20xf32>
    %c0_15 = arith.constant 0 : index
    %c2 = arith.constant 2 : index
    %c0_16 = arith.constant 0 : index
    %28 = vector.load %arg7[%c0_15, %c2, %c0_16] : memref<2x8x20xf32, #tpu.memory_space<vmem>>, vector<2x1x20xf32>
    %29 = vector.shape_cast %28 : vector<2x1x20xf32> to vector<2x20xf32>
    %30 = vector.shape_cast %27 : vector<2x20xf32> to vector<2x1x20xf32>
    tpu.vector_store %arg7[%c0_15, %c2, %c0_16], %30 {strides = array<i32>} : memref<2x8x20xf32, #tpu.memory_space<vmem>>, vector<2x1x20xf32>,
    %31 = vector.extract_strided_slice %7 {offsets = [0, 3, 0], sizes = [2, 1, 20], strides = [1, 1, 1]} : vector<2x8x20xf32> to vector<2x1x20xf32>
    %32 = vector.shape_cast %31 : vector<2x1x20xf32> to vector<2x20xf32>
    %cst_17 = arith.constant dense<0.000000e+00> : vector<2x20xf32>
    %33 = tpu.matmul %27, %8, %cst_17 {dimension_numbers = #tpu.dot_dimension_numbers<[1], [0], [0], [1], [0, 0, 1, 1], [], []>} : vector<2x20xf32>, vector<20x20xf32>, vector<2x20xf32> -> vector<2x20xf32>
    %34 = arith.addf %32, %33 : vector<2x20xf32>
    %35 = math.tanh %34 : vector<2x20xf32>
    %c0_18 = arith.constant 0 : index
    %c3 = arith.constant 3 : index
    %c0_19 = arith.constant 0 : index
    %36 = vector.load %arg7[%c0_18, %c3, %c0_19] : memref<2x8x20xf32, #tpu.memory_space<vmem>>, vector<2x1x20xf32>
    %37 = vector.shape_cast %36 : vector<2x1x20xf32> to vector<2x20xf32>
    %38 = vector.shape_cast %35 : vector<2x20xf32> to vector<2x1x20xf32>
    tpu.vector_store %arg7[%c0_18, %c3, %c0_19], %38 {strides = array<i32>} : memref<2x8x20xf32, #tpu.memory_space<vmem>>, vector<2x1x20xf32>,
    %39 = vector.extract_strided_slice %7 {offsets = [0, 4, 0], sizes = [2, 1, 20], strides = [1, 1, 1]} : vector<2x8x20xf32> to vector<2x1x20xf32>
    %40 = vector.shape_cast %39 : vector<2x1x20xf32> to vector<2x20xf32>
    %cst_20 = arith.constant dense<0.000000e+00> : vector<2x20xf32>
    %41 = tpu.matmul %35, %8, %cst_20 {dimension_numbers = #tpu.dot_dimension_numbers<[1], [0], [0], [1], [0, 0, 1, 1], [], []>} : vector<2x20xf32>, vector<20x20xf32>, vector<2x20xf32> -> vector<2x20xf32>
    %42 = arith.addf %40, %41 : vector<2x20xf32>
    %43 = math.tanh %42 : vector<2x20xf32>
    %c0_21 = arith.constant 0 : index
    %c4 = arith.constant 4 : index
    %c0_22 = arith.constant 0 : index
    %44 = vector.load %arg7[%c0_21, %c4, %c0_22] : memref<2x8x20xf32, #tpu.memory_space<vmem>>, vector<2x1x20xf32>
    %45 = vector.shape_cast %44 : vector<2x1x20xf32> to vector<2x20xf32>
    %46 = vector.shape_cast %43 : vector<2x20xf32> to vector<2x1x20xf32>
    tpu.vector_store %arg7[%c0_21, %c4, %c0_22], %46 {strides = array<i32>} : memref<2x8x20xf32, #tpu.memory_space<vmem>>, vector<2x1x20xf32>,
    %47 = vector.extract_strided_slice %7 {offsets = [0, 5, 0], sizes = [2, 1, 20], strides = [1, 1, 1]} : vector<2x8x20xf32> to vector<2x1x20xf32>
    %48 = vector.shape_cast %47 : vector<2x1x20xf32> to vector<2x20xf32>
    %cst_23 = arith.constant dense<0.000000e+00> : vector<2x20xf32>
    %49 = tpu.matmul %43, %8, %cst_23 {dimension_numbers = #tpu.dot_dimension_numbers<[1], [0], [0], [1], [0, 0, 1, 1], [], []>} : vector<2x20xf32>, vector<20x20xf32>, vector<2x20xf32> -> vector<2x20xf32>
    %50 = arith.addf %48, %49 : vector<2x20xf32>
    %51 = math.tanh %50 : vector<2x20xf32>
    %c0_24 = arith.constant 0 : index
    %c5 = arith.constant 5 : index
    %c0_25 = arith.constant 0 : index
    %52 = vector.load %arg7[%c0_24, %c5, %c0_25] : memref<2x8x20xf32, #tpu.memory_space<vmem>>, vector<2x1x20xf32>
    %53 = vector.shape_cast %52 : vector<2x1x20xf32> to vector<2x20xf32>
    %54 = vector.shape_cast %51 : vector<2x20xf32> to vector<2x1x20xf32>
    tpu.vector_store %arg7[%c0_24, %c5, %c0_25], %54 {strides = array<i32>} : memref<2x8x20xf32, #tpu.memory_space<vmem>>, vector<2x1x20xf32>,
    %55 = vector.extract_strided_slice %7 {offsets = [0, 6, 0], sizes = [2, 1, 20], strides = [1, 1, 1]} : vector<2x8x20xf32> to vector<2x1x20xf32>
    %56 = vector.shape_cast %55 : vector<2x1x20xf32> to vector<2x20xf32>
    %cst_26 = arith.constant dense<0.000000e+00> : vector<2x20xf32>
    %57 = tpu.matmul %51, %8, %cst_26 {dimension_numbers = #tpu.dot_dimension_numbers<[1], [0], [0], [1], [0, 0, 1, 1], [], []>} : vector<2x20xf32>, vector<20x20xf32>, vector<2x20xf32> -> vector<2x20xf32>
    %58 = arith.addf %56, %57 : vector<2x20xf32>
    %59 = math.tanh %58 : vector<2x20xf32>
    %c0_27 = arith.constant 0 : index
    %c6 = arith.constant 6 : index
    %c0_28 = arith.constant 0 : index
    %60 = vector.load %arg7[%c0_27, %c6, %c0_28] : memref<2x8x20xf32, #tpu.memory_space<vmem>>, vector<2x1x20xf32>
    %61 = vector.shape_cast %60 : vector<2x1x20xf32> to vector<2x20xf32>
    %62 = vector.shape_cast %59 : vector<2x20xf32> to vector<2x1x20xf32>
    tpu.vector_store %arg7[%c0_27, %c6, %c0_28], %62 {strides = array<i32>} : memref<2x8x20xf32, #tpu.memory_space<vmem>>, vector<2x1x20xf32>,
    %63 = vector.extract_strided_slice %7 {offsets = [0, 7, 0], sizes = [2, 1, 20], strides = [1, 1, 1]} : vector<2x8x20xf32> to vector<2x1x20xf32>
    %64 = vector.shape_cast %63 : vector<2x1x20xf32> to vector<2x20xf32>
    %cst_29 = arith.constant dense<0.000000e+00> : vector<2x20xf32>
    %65 = tpu.matmul %59, %8, %cst_29 {dimension_numbers = #tpu.dot_dimension_numbers<[1], [0], [0], [1], [0, 0, 1, 1], [], []>} : vector<2x20xf32>, vector<20x20xf32>, vector<2x20xf32> -> vector<2x20xf32>
    %66 = arith.addf %64, %65 : vector<2x20xf32>
    %67 = math.tanh %66 : vector<2x20xf32>
    %c0_30 = arith.constant 0 : index
    %c7 = arith.constant 7 : index
    %c0_31 = arith.constant 0 : index
    %68 = vector.load %arg7[%c0_30, %c7, %c0_31] : memref<2x8x20xf32, #tpu.memory_space<vmem>>, vector<2x1x20xf32>
    %69 = vector.shape_cast %68 : vector<2x1x20xf32> to vector<2x20xf32>
    %70 = vector.shape_cast %67 : vector<2x20xf32> to vector<2x1x20xf32>
    tpu.vector_store %arg7[%c0_30, %c7, %c0_31], %70 {strides = array<i32>} : memref<2x8x20xf32, #tpu.memory_space<vmem>>, vector<2x1x20xf32>,
    %c0_32 = arith.constant 0 : index
    %c0_33 = arith.constant 0 : index
    %c0_34 = arith.constant 0 : index
    %71 = vector.load %arg7[%c0_32, %c0_33, %c0_34] : memref<2x8x20xf32, #tpu.memory_space<vmem>>, vector<2x8x20xf32>
    %72 = vector.shape_cast %71 : vector<2x8x20xf32> to vector<16x20xf32>
    %c0_35 = arith.constant 0 : index
    %c0_36 = arith.constant 0 : index
    %73 = vector.load %arg4[%c0_35, %c0_36] : memref<20x10xf32, #tpu.memory_space<vmem>>, vector<20x10xf32>
    %cst_37 = arith.constant dense<0.000000e+00> : vector<16x10xf32>
    %74 = tpu.matmul %72, %73, %cst_37 {dimension_numbers = #tpu.dot_dimension_numbers<[1], [0], [0], [1], [0, 0, 1, 1], [], []>} : vector<16x20xf32>, vector<20x10xf32>, vector<16x10xf32> -> vector<16x10xf32>
    %c0_38 = arith.constant 0 : index
    %c0_39 = arith.constant 0 : index
    %75 = vector.load %arg5[%c0_38, %c0_39] : memref<1x10xf32, #tpu.memory_space<vmem>>, vector<1x10xf32>
    %76 = vector.broadcast %75 : vector<1x10xf32> to vector<16x10xf32>
    %77 = arith.addf %74, %76 : vector<16x10xf32>
    %78 = vector.shape_cast %77 : vector<16x10xf32> to vector<2x8x10xf32>
    %c0_40 = arith.constant 0 : index
    %c0_41 = arith.constant 0 : index
    %c0_42 = arith.constant 0 : index
    %79 = vector.load %arg6[%c0_40, %c0_41, %c0_42] : memref<2x8x10xf32, #tpu.memory_space<vmem>>, vector<2x8x10xf32>
    tpu.vector_store %arg6[%c0_40, %c0_41, %c0_42], %78 {strides = array<i32>} : memref<2x8x10xf32, #tpu.memory_space<vmem>>, vector<2x8x10xf32>,
    return
  }
}

</mosaic_0001>

<llo_original>
// kernel: model_forward.1
$region0: #{model_forward.1}
  #allocation0 [shape = 'u32[]', space=smem, size = 0x4, offset = 0x4, fixed_abs, tag = 'smem constant byte address 0x4 - core index']
  #allocation1 [shape = 'u32[144,128]{1,0:T(1,128)}', space=vmem, size = 0x12000, scoped, tag = 'internal scratch']
  #allocation2 [shape = 'f32[2,8,20]{2,1,0:T(8,128)}', space=vmem, size = 0x2000, scoped, tag = 'scratch operand']
  %s0 = inlined_call_operand.vmem [shape: f32[2,8,20], index: 0, kind: input, shape index: {}]
  %s1 = inlined_call_operand.vmem [shape: f32[20,20], index: 1, kind: input, shape index: {}]
  %s2 = inlined_call_operand.vmem [shape: f32[20,20], index: 2, kind: input, shape index: {}]
  %s3 = inlined_call_operand.vmem [shape: f32[1,20], index: 3, kind: input, shape index: {}]
  %s4 = inlined_call_operand.vmem [shape: f32[20,10], index: 4, kind: input, shape index: {}]
  %s5 = inlined_call_operand.vmem [shape: f32[1,10], index: 5, kind: input, shape index: {}]
  %s6 = inlined_call_operand.hbm [shape: f32[2,8,10], index: 6, kind: output, shape index: {}]
  %s7 = sld [smem:[#allocation0]]
  $region34: #{model_forward.1} parent=0
    _
  %s9 = ssub.s32 1, %s7
  %s10 = scalar_select 0, %s9, %s7
  $region1: #{model_forward.1} parent=0
    #allocation3 [shape = 'u8[8192]{0}', space=vmem, size = 0x2000, scoped, tag = 'output window, operand 0, single buffered']
    #allocation4 [shape = 's32[1]{0}', space=sflag, size = 0x4, scoped, tag = 'scoped memory for model_forward.1']
    %11 = vsyncpa [#allocation4], 0
    // Predicated region
    $region2: #{model_forward.1} parent=1 // pred_check
      _
    $region3: #{model_forward.1} parent=1 // pred_check_branch
      %13 = sbr.rel (0) target = $region5
    $region4: #{model_forward.1} parent=1 // pred_region
      _
    $region5: #{model_forward.1} parent=1 // pred_fallthru
      _
    // Predicated region
    $region6: #{model_forward.1} parent=1 // pred_check
      _
    $region7: #{model_forward.1} parent=1 // pred_check_branch
      %15 = sbr.rel (0) target = $region9
    $region8: #{model_forward.1} parent=1 // pred_region
      _
    $region9: #{model_forward.1} parent=1 // pred_fallthru
      _
    // Predicated region
    $region10: #{model_forward.1} parent=1 // pred_check
      _
    $region11: #{model_forward.1} parent=1 // pred_check_branch
      %17 = sbr.rel (0) target = $region13
    $region12: #{model_forward.1} parent=1 // pred_region
      _
    $region13: #{model_forward.1} parent=1 // pred_fallthru
      _
    // Predicated region
    $region14: #{model_forward.1} parent=1 // pred_check
      _
    $region15: #{model_forward.1} parent=1 // pred_check_branch
      %19 = sbr.rel (0) target = $region17
    $region16: #{model_forward.1} parent=1 // pred_region
      _
    $region17: #{model_forward.1} parent=1 // pred_fallthru
      _
    // Predicated region
    $region18: #{model_forward.1} parent=1 // pred_check
      _
    $region19: #{model_forward.1} parent=1 // pred_check_branch
      %21 = sbr.rel (0) target = $region21
    $region20: #{model_forward.1} parent=1 // pred_region
      _
    $region21: #{model_forward.1} parent=1 // pred_fallthru
      _
    // Predicated region
    $region22: #{model_forward.1} parent=1 // pred_check
      _
    $region23: #{model_forward.1} parent=1 // pred_check_branch
      %23 = sbr.rel (0) target = $region25
    $region24: #{model_forward.1} parent=1 // pred_region
      _
    $region25: #{model_forward.1} parent=1 // pred_fallthru
      _
    %v24 = vld [vmem:[%s0] sm:$0xff]
    %v25 = vld [vmem:[%s0 + $0x8] sm:$0xff]
    %v26 = vld [vmem:[%s1] sm:$0xff]
    %v27 = vld [vmem:[%s1 + $0x8] sm:$0xff]
    %v28 = vld [vmem:[%s1 + $0x10] sm:$0xf]
    %v29 = vld [vmem:[%s3] sm:$0x1]
    %v31 = vlaneseq
    %v32 = vshrl.u32 %v31, 7
    %v33 = vsub.s32 0, %v32
    %v34 = vrot.slane %v29, %v33
    %vm36 = vcmask 162816
    %v38 = vsel %vm36, %v24, 0
    %v41 = vsel %vm36, %v25, 0
    %vm43 = vcmask 1043456
    %v45 = vsel %vm43, %v28, 0
    %47 = vmatprep.subr.mxu0 0.0
    %48 = vmatpush1.msra.mxu0 %v26
    %49 = vmatprep.subr.mxu0 0.0
    %50 = vmatpush1.msra.mxu0 %v27
    %51 = vmatprep.subr.mxu0 0.0
    %52 = vmatpush1.msra.mxu0 %v45
    %53 = vmatprep.subr.mxu0 0.0
    %54 = vmatpush1.msra.mxu0 0.0
    %55 = vmatprep.subr.mxu0 0.0
    %56 = vmatpush1.msra.mxu0 0.0
    %57 = vmatprep.subr.mxu0 0.0
    %58 = vmatpush1.msra.mxu0 0.0
    %59 = vmatprep.subr.mxu0 0.0
    %60 = vmatpush1.msra.mxu0 0.0
    %61 = vmatprep.subr.mxu0 0.0
    %62 = vmatpush1.msra.mxu0 0.0
    %63 = vmatprep.subr.mxu0 0.0
    %64 = vmatpush1.msra.mxu0 0.0
    %65 = vmatprep.subr.mxu0 0.0
    %66 = vmatpush1.msra.mxu0 0.0
    %67 = vmatprep.subr.mxu0 0.0
    %68 = vmatpush1.msra.mxu0 0.0
    %69 = vmatprep.subr.mxu0 0.0
    %70 = vmatpush1.msra.mxu0 0.0
    %71 = vmatprep.subr.mxu0 0.0
    %72 = vmatpush1.msra.mxu0 0.0
    %73 = vmatprep.subr.mxu0 0.0
    %74 = vmatpush1.msra.mxu0 0.0
    %75 = vmatprep.subr.mxu0 0.0
    %76 = vmatpush1.msra.mxu0 0.0
    %77 = vmatprep.subr.mxu0 0.0
    %78 = vmatpush1.msra.mxu0 0.0
    %79 = vmatprep.subr.mxu0 0.0
    %80 = vmatpush1.msra.mxu0 0.0
    %81 = vmatprep.subr.mxu0 0.0
    %82 = vmatpush1.msra.mxu0 0.0
    %83 = vmatprep.subr.mxu0 0.0
    %84 = vmatpush1.msra.mxu0 0.0
    %85 = vmatprep.subr.mxu0 0.0
    %86 = vmatpush1.msra.mxu0 0.0
    %87 = vmatprep.subr.mxu0 0.0
    %88 = vmatpush1.msra.mxu0 0.0
    %89 = vmatprep.subr.mxu0 0.0
    %90 = vmatpush1.msra.mxu0 0.0
    %91 = vmatprep.subr.mxu0 0.0
    %92 = vmatpush1.msra.mxu0 0.0
    %93 = vmatprep.subr.mxu0 0.0
    %94 = vmatpush1.msra.mxu0 0.0
    %95 = vmatprep.subr.mxu0 0.0
    %96 = vmatpush1.msra.mxu0 0.0
    %97 = vmatprep.subr.mxu0 0.0
    %98 = vmatpush1.msra.mxu0 0.0
    %99 = vmatprep.subr.mxu0 0.0
    %100 = vmatpush1.msra.mxu0 0.0
    %101 = vmatprep.subr.mxu0 0.0
    %102 = vmatpush1.msra.mxu0 0.0
    %103 = vmatprep.subr.mxu0 0.0
    %104 = vmatpush1.msra.mxu0 0.0
    %105 = vmatprep.subr.mxu0 0.0
    %106 = vmatpush1.msra.mxu0 0.0
    %107 = vmatprep.subr.mxu0 0.0
    %108 = vmatpush1.msra.mxu0 0.0
    %109 = vmatprep.subr.mxu0 0.0
    %110 = vmatpush1.msra.mxu0 0.0
    %111 = vmatprep.mubr.f32.mxu0 0.0
    %112 = vmatmul.mubr.f32.gmra.mrb[0].mxu0 %v38
    %v113 = vpop.f32.mrb[0].mxu0
    %v114 = vadd.f32 %v34, %v113
    %v115 = vpop.f32.mrb[0].mxu0
    %116 = vmatprep.mubr.f32.mxu0 0.0
    %117 = vmatmul.mubr.f32.gmra.mrb[0].mxu0 %v41
    %v118 = vpop.f32.mrb[0].mxu0
    %v119 = vadd.f32 %v34, %v118
    %v120 = vpop.f32.mrb[0].mxu0
    %121 = vdwg.mxu0
    %v122 = vld [vmem:[%s2] sm:$0xff]
    %v123 = vld [vmem:[%s2 + $0x8] sm:$0xff]
    %v124 = vld [vmem:[%s2 + $0x10] sm:$0xf]
    %v125 = vtanh.pop %v114
    %v126 = vtanh.pop %v119
    %vm127 = vcmask 155648
    %128 = vst.msk [vmem:[#allocation2] sm:$0x1] %vm127, %v125
    %129 = vst.msk [vmem:[#allocation2 + $0x8] sm:$0x1] %vm127, %v126
    %v132 = vrot.slane %v126, 7
    %vm133 = vcmask 1041409
    %v134 = vsel %vm133, %v132, %v125
    %v135 = vsel %vm36, %v134, 0
    %v138 = vsel %vm43, %v124, 0
    %140 = vmatprep.subr.mxu0 0.0
    %141 = vmatpush1.msra.mxu0 %v122
    %142 = vmatprep.subr.mxu0 0.0
    %143 = vmatpush1.msra.mxu0 %v123
    %144 = vmatprep.subr.mxu0 0.0
    %145 = vmatpush1.msra.mxu0 %v138
    %146 = vmatprep.subr.mxu0 0.0
    %147 = vmatpush1.msra.mxu0 0.0
    %148 = vmatprep.subr.mxu0 0.0
    %149 = vmatpush1.msra.mxu0 0.0
    %150 = vmatprep.subr.mxu0 0.0
    %151 = vmatpush1.msra.mxu0 0.0
    %152 = vmatprep.subr.mxu0 0.0
    %153 = vmatpush1.msra.mxu0 0.0
    %154 = vmatprep.subr.mxu0 0.0
    %155 = vmatpush1.msra.mxu0 0.0
    %156 = vmatprep.subr.mxu0 0.0
    %157 = vmatpush1.msra.mxu0 0.0
    %158 = vmatprep.subr.mxu0 0.0
    %159 = vmatpush1.msra.mxu0 0.0
    %160 = vmatprep.subr.mxu0 0.0
    %161 = vmatpush1.msra.mxu0 0.0
    %162 = vmatprep.subr.mxu0 0.0
    %163 = vmatpush1.msra.mxu0 0.0
    %164 = vmatprep.subr.mxu0 0.0
    %165 = vmatpush1.msra.mxu0 0.0
    %166 = vmatprep.subr.mxu0 0.0
    %167 = vmatpush1.msra.mxu0 0.0
    %168 = vmatprep.subr.mxu0 0.0
    %169 = vmatpush1.msra.mxu0 0.0
    %170 = vmatprep.subr.mxu0 0.0
    %171 = vmatpush1.msra.mxu0 0.0
    %172 = vmatprep.subr.mxu0 0.0
    %173 = vmatpush1.msra.mxu0 0.0
    %174 = vmatprep.subr.mxu0 0.0
    %175 = vmatpush1.msra.mxu0 0.0
    %176 = vmatprep.subr.mxu0 0.0
    %177 = vmatpush1.msra.mxu0 0.0
    %178 = vmatprep.subr.mxu0 0.0
    %179 = vmatpush1.msra.mxu0 0.0
    %180 = vmatprep.subr.mxu0 0.0
    %181 = vmatpush1.msra.mxu0 0.0
    %182 = vmatprep.subr.mxu0 0.0
    %183 = vmatpush1.msra.mxu0 0.0
    %184 = vmatprep.subr.mxu0 0.0
    %185 = vmatpush1.msra.mxu0 0.0
    %186 = vmatprep.subr.mxu0 0.0
    %187 = vmatpush1.msra.mxu0 0.0
    %188 = vmatprep.subr.mxu0 0.0
    %189 = vmatpush1.msra.mxu0 0.0
    %190 = vmatprep.subr.mxu0 0.0
    %191 = vmatpush1.msra.mxu0 0.0
    %192 = vmatprep.subr.mxu0 0.0
    %193 = vmatpush1.msra.mxu0 0.0
    %194 = vmatprep.subr.mxu0 0.0
    %195 = vmatpush1.msra.mxu0 0.0
    %196 = vmatprep.subr.mxu0 0.0
    %197 = vmatpush1.msra.mxu0 0.0
    %198 = vmatprep.subr.mxu0 0.0
    %199 = vmatpush1.msra.mxu0 0.0
    %200 = vmatprep.subr.mxu0 0.0
    %201 = vmatpush1.msra.mxu0 0.0
    %202 = vmatprep.subr.mxu0 0.0
    %203 = vmatpush1.msra.mxu0 0.0
    %204 = vmatprep.mubr.f32.mxu0 0.0
    %205 = vmatmul.mubr.f32.gmra.mrb[0].mxu0 %v135
    %v206 = vpop.f32.mrb[0].mxu0
    %v207 = vadd.f32 0.0, %v206
    %v208 = vpop.f32.mrb[0].mxu0
    %209 = vdwg.mxu0
    %v211 = vrot.slane %v207, 7
    %v214 = vadd.f32 %v114, %v211
    %v215 = vadd.f32 %v119, %v207
    %v216 = vtanh.pop %v214
    %v217 = vtanh.pop %v215
    %vm218 = vcmask 156673
    %219 = vst.msk [vmem:[#allocation2] sm:$0x2] %vm218, %v216
    %220 = vst.msk [vmem:[#allocation2 + $0x8] sm:$0x2] %vm218, %v217
    %v223 = vrot.slane %v216, 1
    %v224 = vsel %vm133, %v217, %v223
    %v225 = vsel %vm36, %v224, 0
    %227 = vmatprep.subr.mxu0 0.0
    %228 = vmatpush1.msra.mxu0 %v122
    %229 = vmatprep.subr.mxu0 0.0
    %230 = vmatpush1.msra.mxu0 %v123
    %231 = vmatprep.subr.mxu0 0.0
    %232 = vmatpush1.msra.mxu0 %v138
    %233 = vmatprep.subr.mxu0 0.0
    %234 = vmatpush1.msra.mxu0 0.0
    %235 = vmatprep.subr.mxu0 0.0
    %236 = vmatpush1.msra.mxu0 0.0
    %237 = vmatprep.subr.mxu0 0.0
    %238 = vmatpush1.msra.mxu0 0.0
    %239 = vmatprep.subr.mxu0 0.0
    %240 = vmatpush1.msra.mxu0 0.0
    %241 = vmatprep.subr.mxu0 0.0
    %242 = vmatpush1.msra.mxu0 0.0
    %243 = vmatprep.subr.mxu0 0.0
    %244 = vmatpush1.msra.mxu0 0.0
    %245 = vmatprep.subr.mxu0 0.0
    %246 = vmatpush1.msra.mxu0 0.0
    %247 = vmatprep.subr.mxu0 0.0
    %248 = vmatpush1.msra.mxu0 0.0
    %249 = vmatprep.subr.mxu0 0.0
    %250 = vmatpush1.msra.mxu0 0.0
    %251 = vmatprep.subr.mxu0 0.0
    %252 = vmatpush1.msra.mxu0 0.0
    %253 = vmatprep.subr.mxu0 0.0
    %254 = vmatpush1.msra.mxu0 0.0
    %255 = vmatprep.subr.mxu0 0.0
    %256 = vmatpush1.msra.mxu0 0.0
    %257 = vmatprep.subr.mxu0 0.0
    %258 = vmatpush1.msra.mxu0 0.0
    %259 = vmatprep.subr.mxu0 0.0
    %260 = vmatpush1.msra.mxu0 0.0
    %261 = vmatprep.subr.mxu0 0.0
    %262 = vmatpush1.msra.mxu0 0.0
    %263 = vmatprep.subr.mxu0 0.0
    %264 = vmatpush1.msra.mxu0 0.0
    %265 = vmatprep.subr.mxu0 0.0
    %266 = vmatpush1.msra.mxu0 0.0
    %267 = vmatprep.subr.mxu0 0.0
    %268 = vmatpush1.msra.mxu0 0.0
    %269 = vmatprep.subr.mxu0 0.0
    %270 = vmatpush1.msra.mxu0 0.0
    %271 = vmatprep.subr.mxu0 0.0
    %272 = vmatpush1.msra.mxu0 0.0
    %273 = vmatprep.subr.mxu0 0.0
    %274 = vmatpush1.msra.mxu0 0.0
    %275 = vmatprep.subr.mxu0 0.0
    %276 = vmatpush1.msra.mxu0 0.0
    %277 = vmatprep.subr.mxu0 0.0
    %278 = vmatpush1.msra.mxu0 0.0
    %279 = vmatprep.subr.mxu0 0.0
    %280 = vmatpush1.msra.mxu0 0.0
    %281 = vmatprep.subr.mxu0 0.0
    %282 = vmatpush1.msra.mxu0 0.0
    %283 = vmatprep.subr.mxu0 0.0
    %284 = vmatpush1.msra.mxu0 0.0
    %285 = vmatprep.subr.mxu0 0.0
    %286 = vmatpush1.msra.mxu0 0.0
    %287 = vmatprep.subr.mxu0 0.0
    %288 = vmatpush1.msra.mxu0 0.0
    %289 = vmatprep.subr.mxu0 0.0
    %290 = vmatpush1.msra.mxu0 0.0
    %291 = vmatprep.mubr.f32.mxu0 0.0
    %292 = vmatmul.mubr.f32.gmra.mrb[0].mxu0 %v225
    %v293 = vpop.f32.mrb[0].mxu0
    %v294 = vadd.f32 0.0, %v293
    %v295 = vpop.f32.mrb[0].mxu0
    %296 = vdwg.mxu0
    %v298 = vrot.slane %v294, 6
    %v299 = vrot.slane %v294, 7
    %v302 = vadd.f32 %v114, %v298
    %v303 = vadd.f32 %v119, %v299
    %v304 = vtanh.pop %v302
    %v305 = vtanh.pop %v303
    %vm306 = vcmask 157698
    %307 = vst.msk [vmem:[#allocation2] sm:$0x4] %vm306, %v304
    %308 = vst.msk [vmem:[#allocation2 + $0x8] sm:$0x4] %vm306, %v305
    %v311 = vrot.slane %v304, 2
    %v312 = vrot.slane %v305, 1
    %v313 = vsel %vm133, %v312, %v311
    %v314 = vsel %vm36, %v313, 0
    %316 = vmatprep.subr.mxu0 0.0
    %317 = vmatpush1.msra.mxu0 %v122
    %318 = vmatprep.subr.mxu0 0.0
    %319 = vmatpush1.msra.mxu0 %v123
    %320 = vmatprep.subr.mxu0 0.0
    %321 = vmatpush1.msra.mxu0 %v138
    %322 = vmatprep.subr.mxu0 0.0
    %323 = vmatpush1.msra.mxu0 0.0
    %324 = vmatprep.subr.mxu0 0.0
    %325 = vmatpush1.msra.mxu0 0.0
    %326 = vmatprep.subr.mxu0 0.0
    %327 = vmatpush1.msra.mxu0 0.0
    %328 = vmatprep.subr.mxu0 0.0
    %329 = vmatpush1.msra.mxu0 0.0
    %330 = vmatprep.subr.mxu0 0.0
    %331 = vmatpush1.msra.mxu0 0.0
    %332 = vmatprep.subr.mxu0 0.0
    %333 = vmatpush1.msra.mxu0 0.0
    %334 = vmatprep.subr.mxu0 0.0
    %335 = vmatpush1.msra.mxu0 0.0
    %336 = vmatprep.subr.mxu0 0.0
    %337 = vmatpush1.msra.mxu0 0.0
    %338 = vmatprep.subr.mxu0 0.0
    %339 = vmatpush1.msra.mxu0 0.0
    %340 = vmatprep.subr.mxu0 0.0
    %341 = vmatpush1.msra.mxu0 0.0
    %342 = vmatprep.subr.mxu0 0.0
    %343 = vmatpush1.msra.mxu0 0.0
    %344 = vmatprep.subr.mxu0 0.0
    %345 = vmatpush1.msra.mxu0 0.0
    %346 = vmatprep.subr.mxu0 0.0
    %347 = vmatpush1.msra.mxu0 0.0
    %348 = vmatprep.subr.mxu0 0.0
    %349 = vmatpush1.msra.mxu0 0.0
    %350 = vmatprep.subr.mxu0 0.0
    %351 = vmatpush1.msra.mxu0 0.0
    %352 = vmatprep.subr.mxu0 0.0
    %353 = vmatpush1.msra.mxu0 0.0
    %354 = vmatprep.subr.mxu0 0.0
    %355 = vmatpush1.msra.mxu0 0.0
    %356 = vmatprep.subr.mxu0 0.0
    %357 = vmatpush1.msra.mxu0 0.0
    %358 = vmatprep.subr.mxu0 0.0
    %359 = vmatpush1.msra.mxu0 0.0
    %360 = vmatprep.subr.mxu0 0.0
    %361 = vmatpush1.msra.mxu0 0.0
    %362 = vmatprep.subr.mxu0 0.0
    %363 = vmatpush1.msra.mxu0 0.0
    %364 = vmatprep.subr.mxu0 0.0
    %365 = vmatpush1.msra.mxu0 0.0
    %366 = vmatprep.subr.mxu0 0.0
    %367 = vmatpush1.msra.mxu0 0.0
    %368 = vmatprep.subr.mxu0 0.0
    %369 = vmatpush1.msra.mxu0 0.0
    %370 = vmatprep.subr.mxu0 0.0
    %371 = vmatpush1.msra.mxu0 0.0
    %372 = vmatprep.subr.mxu0 0.0
    %373 = vmatpush1.msra.mxu0 0.0
    %374 = vmatprep.subr.mxu0 0.0
    %375 = vmatpush1.msra.mxu0 0.0
    %376 = vmatprep.subr.mxu0 0.0
    %377 = vmatpush1.msra.mxu0 0.0
    %378 = vmatprep.subr.mxu0 0.0
    %379 = vmatpush1.msra.mxu0 0.0
    %380 = vmatprep.mubr.f32.mxu0 0.0
    %381 = vmatmul.mubr.f32.gmra.mrb[0].mxu0 %v314
    %v382 = vpop.f32.mrb[0].mxu0
    %v383 = vadd.f32 0.0, %v382
    %v384 = vpop.f32.mrb[0].mxu0
    %385 = vdwg.mxu0
    %v387 = vrot.slane %v383, 5
    %v388 = vrot.slane %v383, 6
    %v391 = vadd.f32 %v114, %v387
    %v392 = vadd.f32 %v119, %v388
    %v393 = vtanh.pop %v391
    %v394 = vtanh.pop %v392
    %vm395 = vcmask 158723
    %396 = vst.msk [vmem:[#allocation2] sm:$0x8] %vm395, %v393
    %397 = vst.msk [vmem:[#allocation2 + $0x8] sm:$0x8] %vm395, %v394
    %v400 = vrot.slane %v393, 3
    %v401 = vrot.slane %v394, 2
    %v402 = vsel %vm133, %v401, %v400
    %v403 = vsel %vm36, %v402, 0
    %405 = vmatprep.subr.mxu0 0.0
    %406 = vmatpush1.msra.mxu0 %v122
    %407 = vmatprep.subr.mxu0 0.0
    %408 = vmatpush1.msra.mxu0 %v123
    %409 = vmatprep.subr.mxu0 0.0
    %410 = vmatpush1.msra.mxu0 %v138
    %411 = vmatprep.subr.mxu0 0.0
    %412 = vmatpush1.msra.mxu0 0.0
    %413 = vmatprep.subr.mxu0 0.0
    %414 = vmatpush1.msra.mxu0 0.0
    %415 = vmatprep.subr.mxu0 0.0
    %416 = vmatpush1.msra.mxu0 0.0
    %417 = vmatprep.subr.mxu0 0.0
    %418 = vmatpush1.msra.mxu0 0.0
    %419 = vmatprep.subr.mxu0 0.0
    %420 = vmatpush1.msra.mxu0 0.0
    %421 = vmatprep.subr.mxu0 0.0
    %422 = vmatpush1.msra.mxu0 0.0
    %423 = vmatprep.subr.mxu0 0.0
    %424 = vmatpush1.msra.mxu0 0.0
    %425 = vmatprep.subr.mxu0 0.0
    %426 = vmatpush1.msra.mxu0 0.0
    %427 = vmatprep.subr.mxu0 0.0
    %428 = vmatpush1.msra.mxu0 0.0
    %429 = vmatprep.subr.mxu0 0.0
    %430 = vmatpush1.msra.mxu0 0.0
    %431 = vmatprep.subr.mxu0 0.0
    %432 = vmatpush1.msra.mxu0 0.0
    %433 = vmatprep.subr.mxu0 0.0
    %434 = vmatpush1.msra.mxu0 0.0
    %435 = vmatprep.subr.mxu0 0.0
    %436 = vmatpush1.msra.mxu0 0.0
    %437 = vmatprep.subr.mxu0 0.0
    %438 = vmatpush1.msra.mxu0 0.0
    %439 = vmatprep.subr.mxu0 0.0
    %440 = vmatpush1.msra.mxu0 0.0
    %441 = vmatprep.subr.mxu0 0.0
    %442 = vmatpush1.msra.mxu0 0.0
    %443 = vmatprep.subr.mxu0 0.0
    %444 = vmatpush1.msra.mxu0 0.0
    %445 = vmatprep.subr.mxu0 0.0
    %446 = vmatpush1.msra.mxu0 0.0
    %447 = vmatprep.subr.mxu0 0.0
    %448 = vmatpush1.msra.mxu0 0.0
    %449 = vmatprep.subr.mxu0 0.0
    %450 = vmatpush1.msra.mxu0 0.0
    %451 = vmatprep.subr.mxu0 0.0
    %452 = vmatpush1.msra.mxu0 0.0
    %453 = vmatprep.subr.mxu0 0.0
    %454 = vmatpush1.msra.mxu0 0.0
    %455 = vmatprep.subr.mxu0 0.0
    %456 = vmatpush1.msra.mxu0 0.0
    %457 = vmatprep.subr.mxu0 0.0
    %458 = vmatpush1.msra.mxu0 0.0
    %459 = vmatprep.subr.mxu0 0.0
    %460 = vmatpush1.msra.mxu0 0.0
    %461 = vmatprep.subr.mxu0 0.0
    %462 = vmatpush1.msra.mxu0 0.0
    %463 = vmatprep.subr.mxu0 0.0
    %464 = vmatpush1.msra.mxu0 0.0
    %465 = vmatprep.subr.mxu0 0.0
    %466 = vmatpush1.msra.mxu0 0.0
    %467 = vmatprep.subr.mxu0 0.0
    %468 = vmatpush1.msra.mxu0 0.0
    %469 = vmatprep.mubr.f32.mxu0 0.0
    %470 = vmatmul.mubr.f32.gmra.mrb[0].mxu0 %v403
    %v471 = vpop.f32.mrb[0].mxu0
    %v472 = vadd.f32 0.0, %v471
    %v473 = vpop.f32.mrb[0].mxu0
    %474 = vdwg.mxu0
    %v476 = vrot.slane %v472, 4
    %v477 = vrot.slane %v472, 5
    %v480 = vadd.f32 %v114, %v476
    %v481 = vadd.f32 %v119, %v477
    %v482 = vtanh.pop %v480
    %v483 = vtanh.pop %v481
    %vm484 = vcmask 159748
    %485 = vst.msk [vmem:[#allocation2] sm:$0x10] %vm484, %v482
    %486 = vst.msk [vmem:[#allocation2 + $0x8] sm:$0x10] %vm484, %v483
    %v489 = vrot.slane %v482, 4
    %v490 = vrot.slane %v483, 3
    %v491 = vsel %vm133, %v490, %v489
    %v492 = vsel %vm36, %v491, 0
    %494 = vmatprep.subr.mxu0 0.0
    %495 = vmatpush1.msra.mxu0 %v122
    %496 = vmatprep.subr.mxu0 0.0
    %497 = vmatpush1.msra.mxu0 %v123
    %498 = vmatprep.subr.mxu0 0.0
    %499 = vmatpush1.msra.mxu0 %v138
    %500 = vmatprep.subr.mxu0 0.0
    %501 = vmatpush1.msra.mxu0 0.0
    %502 = vmatprep.subr.mxu0 0.0
    %503 = vmatpush1.msra.mxu0 0.0
    %504 = vmatprep.subr.mxu0 0.0
    %505 = vmatpush1.msra.mxu0 0.0
    %506 = vmatprep.subr.mxu0 0.0
    %507 = vmatpush1.msra.mxu0 0.0
    %508 = vmatprep.subr.mxu0 0.0
    %509 = vmatpush1.msra.mxu0 0.0
    %510 = vmatprep.subr.mxu0 0.0
    %511 = vmatpush1.msra.mxu0 0.0
    %512 = vmatprep.subr.mxu0 0.0
    %513 = vmatpush1.msra.mxu0 0.0
    %514 = vmatprep.subr.mxu0 0.0
    %515 = vmatpush1.msra.mxu0 0.0
    %516 = vmatprep.subr.mxu0 0.0
    %517 = vmatpush1.msra.mxu0 0.0
    %518 = vmatprep.subr.mxu0 0.0
    %519 = vmatpush1.msra.mxu0 0.0
    %520 = vmatprep.subr.mxu0 0.0
    %521 = vmatpush1.msra.mxu0 0.0
    %522 = vmatprep.subr.mxu0 0.0
    %523 = vmatpush1.msra.mxu0 0.0
    %524 = vmatprep.subr.mxu0 0.0
    %525 = vmatpush1.msra.mxu0 0.0
    %526 = vmatprep.subr.mxu0 0.0
    %527 = vmatpush1.msra.mxu0 0.0
    %528 = vmatprep.subr.mxu0 0.0
    %529 = vmatpush1.msra.mxu0 0.0
    %530 = vmatprep.subr.mxu0 0.0
    %531 = vmatpush1.msra.mxu0 0.0
    %532 = vmatprep.subr.mxu0 0.0
    %533 = vmatpush1.msra.mxu0 0.0
    %534 = vmatprep.subr.mxu0 0.0
    %535 = vmatpush1.msra.mxu0 0.0
    %536 = vmatprep.subr.mxu0 0.0
    %537 = vmatpush1.msra.mxu0 0.0
    %538 = vmatprep.subr.mxu0 0.0
    %539 = vmatpush1.msra.mxu0 0.0
    %540 = vmatprep.subr.mxu0 0.0
    %541 = vmatpush1.msra.mxu0 0.0
    %542 = vmatprep.subr.mxu0 0.0
    %543 = vmatpush1.msra.mxu0 0.0
    %544 = vmatprep.subr.mxu0 0.0
    %545 = vmatpush1.msra.mxu0 0.0
    %546 = vmatprep.subr.mxu0 0.0
    %547 = vmatpush1.msra.mxu0 0.0
    %548 = vmatprep.subr.mxu0 0.0
    %549 = vmatpush1.msra.mxu0 0.0
    %550 = vmatprep.subr.mxu0 0.0
    %551 = vmatpush1.msra.mxu0 0.0
    %552 = vmatprep.subr.mxu0 0.0
    %553 = vmatpush1.msra.mxu0 0.0
    %554 = vmatprep.subr.mxu0 0.0
    %555 = vmatpush1.msra.mxu0 0.0
    %556 = vmatprep.subr.mxu0 0.0
    %557 = vmatpush1.msra.mxu0 0.0
    %558 = vmatprep.mubr.f32.mxu0 0.0
    %559 = vmatmul.mubr.f32.gmra.mrb[0].mxu0 %v492
    %v560 = vpop.f32.mrb[0].mxu0
    %v561 = vadd.f32 0.0, %v560
    %v562 = vpop.f32.mrb[0].mxu0
    %563 = vdwg.mxu0
    %v565 = vrot.slane %v561, 3
    %v566 = vrot.slane %v561, 4
    %v569 = vadd.f32 %v114, %v565
    %v570 = vadd.f32 %v119, %v566
    %v571 = vtanh.pop %v569
    %v572 = vtanh.pop %v570
    %vm573 = vcmask 160773
    %574 = vst.msk [vmem:[#allocation2] sm:$0x20] %vm573, %v571
    %575 = vst.msk [vmem:[#allocation2 + $0x8] sm:$0x20] %vm573, %v572
    %v578 = vrot.slane %v571, 5
    %v579 = vrot.slane %v572, 4
    %v580 = vsel %vm133, %v579, %v578
    %v581 = vsel %vm36, %v580, 0
    %583 = vmatprep.subr.mxu0 0.0
    %584 = vmatpush1.msra.mxu0 %v122
    %585 = vmatprep.subr.mxu0 0.0
    %586 = vmatpush1.msra.mxu0 %v123
    %587 = vmatprep.subr.mxu0 0.0
    %588 = vmatpush1.msra.mxu0 %v138
    %589 = vmatprep.subr.mxu0 0.0
    %590 = vmatpush1.msra.mxu0 0.0
    %591 = vmatprep.subr.mxu0 0.0
    %592 = vmatpush1.msra.mxu0 0.0
    %593 = vmatprep.subr.mxu0 0.0
    %594 = vmatpush1.msra.mxu0 0.0
    %595 = vmatprep.subr.mxu0 0.0
    %596 = vmatpush1.msra.mxu0 0.0
    %597 = vmatprep.subr.mxu0 0.0
    %598 = vmatpush1.msra.mxu0 0.0
    %599 = vmatprep.subr.mxu0 0.0
    %600 = vmatpush1.msra.mxu0 0.0
    %601 = vmatprep.subr.mxu0 0.0
    %602 = vmatpush1.msra.mxu0 0.0
    %603 = vmatprep.subr.mxu0 0.0
    %604 = vmatpush1.msra.mxu0 0.0
    %605 = vmatprep.subr.mxu0 0.0
    %606 = vmatpush1.msra.mxu0 0.0
    %607 = vmatprep.subr.mxu0 0.0
    %608 = vmatpush1.msra.mxu0 0.0
    %609 = vmatprep.subr.mxu0 0.0
    %610 = vmatpush1.msra.mxu0 0.0
    %611 = vmatprep.subr.mxu0 0.0
    %612 = vmatpush1.msra.mxu0 0.0
    %613 = vmatprep.subr.mxu0 0.0
    %614 = vmatpush1.msra.mxu0 0.0
    %615 = vmatprep.subr.mxu0 0.0
    %616 = vmatpush1.msra.mxu0 0.0
    %617 = vmatprep.subr.mxu0 0.0
    %618 = vmatpush1.msra.mxu0 0.0
    %619 = vmatprep.subr.mxu0 0.0
    %620 = vmatpush1.msra.mxu0 0.0
    %621 = vmatprep.subr.mxu0 0.0
    %622 = vmatpush1.msra.mxu0 0.0
    %623 = vmatprep.subr.mxu0 0.0
    %624 = vmatpush1.msra.mxu0 0.0
    %625 = vmatprep.subr.mxu0 0.0
    %626 = vmatpush1.msra.mxu0 0.0
    %627 = vmatprep.subr.mxu0 0.0
    %628 = vmatpush1.msra.mxu0 0.0
    %629 = vmatprep.subr.mxu0 0.0
    %630 = vmatpush1.msra.mxu0 0.0
    %631 = vmatprep.subr.mxu0 0.0
    %632 = vmatpush1.msra.mxu0 0.0
    %633 = vmatprep.subr.mxu0 0.0
    %634 = vmatpush1.msra.mxu0 0.0
    %635 = vmatprep.subr.mxu0 0.0
    %636 = vmatpush1.msra.mxu0 0.0
    %637 = vmatprep.subr.mxu0 0.0
    %638 = vmatpush1.msra.mxu0 0.0
    %639 = vmatprep.subr.mxu0 0.0
    %640 = vmatpush1.msra.mxu0 0.0
    %641 = vmatprep.subr.mxu0 0.0
    %642 = vmatpush1.msra.mxu0 0.0
    %643 = vmatprep.subr.mxu0 0.0
    %644 = vmatpush1.msra.mxu0 0.0
    %645 = vmatprep.subr.mxu0 0.0
    %646 = vmatpush1.msra.mxu0 0.0
    %647 = vmatprep.mubr.f32.mxu0 0.0
    %648 = vmatmul.mubr.f32.gmra.mrb[0].mxu0 %v581
    %v649 = vpop.f32.mrb[0].mxu0
    %v650 = vadd.f32 0.0, %v649
    %v651 = vpop.f32.mrb[0].mxu0
    %652 = vdwg.mxu0
    %v654 = vrot.slane %v650, 2
    %v655 = vrot.slane %v650, 3
    %v658 = vadd.f32 %v114, %v654
    %v659 = vadd.f32 %v119, %v655
    %v660 = vtanh.pop %v658
    %v661 = vtanh.pop %v659
    %vm662 = vcmask 161798
    %663 = vst.msk [vmem:[#allocation2] sm:$0x40] %vm662, %v660
    %664 = vst.msk [vmem:[#allocation2 + $0x8] sm:$0x40] %vm662, %v661
    %v667 = vrot.slane %v660, 6
    %v668 = vrot.slane %v661, 5
    %v669 = vsel %vm133, %v668, %v667
    %v670 = vsel %vm36, %v669, 0
    %672 = vmatprep.subr.mxu0 0.0
    %673 = vmatpush1.msra.mxu0 %v122
    %674 = vmatprep.subr.mxu0 0.0
    %675 = vmatpush1.msra.mxu0 %v123
    %676 = vmatprep.subr.mxu0 0.0
    %677 = vmatpush1.msra.mxu0 %v138
    %678 = vmatprep.subr.mxu0 0.0
    %679 = vmatpush1.msra.mxu0 0.0
    %680 = vmatprep.subr.mxu0 0.0
    %681 = vmatpush1.msra.mxu0 0.0
    %682 = vmatprep.subr.mxu0 0.0
    %683 = vmatpush1.msra.mxu0 0.0
    %684 = vmatprep.subr.mxu0 0.0
    %685 = vmatpush1.msra.mxu0 0.0
    %686 = vmatprep.subr.mxu0 0.0
    %687 = vmatpush1.msra.mxu0 0.0
    %688 = vmatprep.subr.mxu0 0.0
    %689 = vmatpush1.msra.mxu0 0.0
    %690 = vmatprep.subr.mxu0 0.0
    %691 = vmatpush1.msra.mxu0 0.0
    %692 = vmatprep.subr.mxu0 0.0
    %693 = vmatpush1.msra.mxu0 0.0
    %694 = vmatprep.subr.mxu0 0.0
    %695 = vmatpush1.msra.mxu0 0.0
    %696 = vmatprep.subr.mxu0 0.0
    %697 = vmatpush1.msra.mxu0 0.0
    %698 = vmatprep.subr.mxu0 0.0
    %699 = vmatpush1.msra.mxu0 0.0
    %700 = vmatprep.subr.mxu0 0.0
    %701 = vmatpush1.msra.mxu0 0.0
    %702 = vmatprep.subr.mxu0 0.0
    %703 = vmatpush1.msra.mxu0 0.0
    %704 = vmatprep.subr.mxu0 0.0
    %705 = vmatpush1.msra.mxu0 0.0
    %706 = vmatprep.subr.mxu0 0.0
    %707 = vmatpush1.msra.mxu0 0.0
    %708 = vmatprep.subr.mxu0 0.0
    %709 = vmatpush1.msra.mxu0 0.0
    %710 = vmatprep.subr.mxu0 0.0
    %711 = vmatpush1.msra.mxu0 0.0
    %712 = vmatprep.subr.mxu0 0.0
    %713 = vmatpush1.msra.mxu0 0.0
    %714 = vmatprep.subr.mxu0 0.0
    %715 = vmatpush1.msra.mxu0 0.0
    %716 = vmatprep.subr.mxu0 0.0
    %717 = vmatpush1.msra.mxu0 0.0
    %718 = vmatprep.subr.mxu0 0.0
    %719 = vmatpush1.msra.mxu0 0.0
    %720 = vmatprep.subr.mxu0 0.0
    %721 = vmatpush1.msra.mxu0 0.0
    %722 = vmatprep.subr.mxu0 0.0
    %723 = vmatpush1.msra.mxu0 0.0
    %724 = vmatprep.subr.mxu0 0.0
    %725 = vmatpush1.msra.mxu0 0.0
    %726 = vmatprep.subr.mxu0 0.0
    %727 = vmatpush1.msra.mxu0 0.0
    %728 = vmatprep.subr.mxu0 0.0
    %729 = vmatpush1.msra.mxu0 0.0
    %730 = vmatprep.subr.mxu0 0.0
    %731 = vmatpush1.msra.mxu0 0.0
    %732 = vmatprep.subr.mxu0 0.0
    %733 = vmatpush1.msra.mxu0 0.0
    %734 = vmatprep.subr.mxu0 0.0
    %735 = vmatpush1.msra.mxu0 0.0
    %736 = vmatprep.mubr.f32.mxu0 0.0
    %737 = vmatmul.mubr.f32.gmra.mrb[0].mxu0 %v670
    %v738 = vpop.f32.mrb[0].mxu0
    %v739 = vadd.f32 0.0, %v738
    %v740 = vpop.f32.mrb[0].mxu0
    %741 = vdwg.mxu0
    %v743 = vrot.slane %v739, 1
    %v744 = vrot.slane %v739, 2
    %v747 = vadd.f32 %v114, %v743
    %v748 = vadd.f32 %v119, %v744
    %v749 = vtanh.pop %v747
    %v750 = vtanh.pop %v748
    %vm751 = vcmask 162823
    %752 = vst.msk [vmem:[#allocation2] sm:$0x80] %vm751, %v749
    %753 = vst.msk [vmem:[#allocation2 + $0x8] sm:$0x80] %vm751, %v750
    %v754 = vld [vmem:[#allocation2] sm:$0xff]
    %v755 = vld [vmem:[#allocation2 + $0x8] sm:$0xff]
    %v756 = vld [vmem:[%s4] sm:$0xff]
    %v757 = vld [vmem:[%s4 + $0x8] sm:$0xff]
    %v758 = vld [vmem:[%s4 + $0x10] sm:$0xf]
    %v759 = vld [vmem:[%s5] sm:$0x1]
    %v761 = vlaneseq
    %v762 = vshrl.u32 %v761, 7
    %v763 = vsub.s32 0, %v762
    %v764 = vrot.slane %v759, %v763
    %v767 = vsel %vm36, %v754, 0
    %v770 = vsel %vm36, %v755, 0
    %v773 = vsel %vm43, %v758, 0
    %775 = vmatprep.subr.mxu0 0.0
    %776 = vmatpush1.msra.mxu0 %v756
    %777 = vmatprep.subr.mxu0 0.0
    %778 = vmatpush1.msra.mxu0 %v757
    %779 = vmatprep.subr.mxu0 0.0
    %780 = vmatpush1.msra.mxu0 %v773
    %781 = vmatprep.subr.mxu0 0.0
    %782 = vmatpush1.msra.mxu0 0.0
    %783 = vmatprep.subr.mxu0 0.0
    %784 = vmatpush1.msra.mxu0 0.0
    %785 = vmatprep.subr.mxu0 0.0
    %786 = vmatpush1.msra.mxu0 0.0
    %787 = vmatprep.subr.mxu0 0.0
    %788 = vmatpush1.msra.mxu0 0.0
    %789 = vmatprep.subr.mxu0 0.0
    %790 = vmatpush1.msra.mxu0 0.0
    %791 = vmatprep.subr.mxu0 0.0
    %792 = vmatpush1.msra.mxu0 0.0
    %793 = vmatprep.subr.mxu0 0.0
    %794 = vmatpush1.msra.mxu0 0.0
    %795 = vmatprep.subr.mxu0 0.0
    %796 = vmatpush1.msra.mxu0 0.0
    %797 = vmatprep.subr.mxu0 0.0
    %798 = vmatpush1.msra.mxu0 0.0
    %799 = vmatprep.subr.mxu0 0.0
    %800 = vmatpush1.msra.mxu0 0.0
    %801 = vmatprep.subr.mxu0 0.0
    %802 = vmatpush1.msra.mxu0 0.0
    %803 = vmatprep.subr.mxu0 0.0
    %804 = vmatpush1.msra.mxu0 0.0
    %805 = vmatprep.subr.mxu0 0.0
    %806 = vmatpush1.msra.mxu0 0.0
    %807 = vmatprep.subr.mxu0 0.0
    %808 = vmatpush1.msra.mxu0 0.0
    %809 = vmatprep.subr.mxu0 0.0
    %810 = vmatpush1.msra.mxu0 0.0
    %811 = vmatprep.subr.mxu0 0.0
    %812 = vmatpush1.msra.mxu0 0.0
    %813 = vmatprep.subr.mxu0 0.0
    %814 = vmatpush1.msra.mxu0 0.0
    %815 = vmatprep.subr.mxu0 0.0
    %816 = vmatpush1.msra.mxu0 0.0
    %817 = vmatprep.subr.mxu0 0.0
    %818 = vmatpush1.msra.mxu0 0.0
    %819 = vmatprep.subr.mxu0 0.0
    %820 = vmatpush1.msra.mxu0 0.0
    %821 = vmatprep.subr.mxu0 0.0
    %822 = vmatpush1.msra.mxu0 0.0
    %823 = vmatprep.subr.mxu0 0.0
    %824 = vmatpush1.msra.mxu0 0.0
    %825 = vmatprep.subr.mxu0 0.0
    %826 = vmatpush1.msra.mxu0 0.0
    %827 = vmatprep.subr.mxu0 0.0
    %828 = vmatpush1.msra.mxu0 0.0
    %829 = vmatprep.subr.mxu0 0.0
    %830 = vmatpush1.msra.mxu0 0.0
    %831 = vmatprep.subr.mxu0 0.0
    %832 = vmatpush1.msra.mxu0 0.0
    %833 = vmatprep.subr.mxu0 0.0
    %834 = vmatpush1.msra.mxu0 0.0
    %835 = vmatprep.subr.mxu0 0.0
    %836 = vmatpush1.msra.mxu0 0.0
    %837 = vmatprep.subr.mxu0 0.0
    %838 = vmatpush1.msra.mxu0 0.0
    %839 = vmatprep.mubr.f32.mxu0 0.0
    %840 = vmatmul.mubr.f32.gmra.mrb[0].mxu0 %v767
    %v841 = vpop.f32.mrb[0].mxu0
    %v842 = vadd.f32 %v764, %v841
    %v843 = vpop.f32.mrb[0].mxu0
    %844 = vmatprep.mubr.f32.mxu0 0.0
    %845 = vmatmul.mubr.f32.gmra.mrb[0].mxu0 %v770
    %v846 = vpop.f32.mrb[0].mxu0
    %v847 = vadd.f32 %v764, %v846
    %v848 = vpop.f32.mrb[0].mxu0
    %849 = vdwg.mxu0
    %vm850 = vcmask 80896
    %851 = vst.msk [vmem:[#allocation3] sm:$0xff] %vm850, %v842
    %852 = vst.msk [vmem:[#allocation3 + $0x8] sm:$0xff] %vm850, %v847
    // Predicated region
    $region26: #{model_forward.1} parent=1 // pred_check
      _
    $region27: #{model_forward.1} parent=1 // pred_check_branch
      %854 = sbr.rel (0) target = $region29
    $region28: #{model_forward.1} parent=1 // pred_region
      %s856 = ssub.s32 256, 256
      %857 = vsyncadd [#allocation4], %s856
      %s858 = sshll.u32 [#allocation3], 4
      %s859 = int_to_ptr.vmem [resolvable:$true] %s858
      %864 = dma.vmem_to_hbm [thread:$0]  %s859, 256, %s6, [#allocation4], 128, 128, 8
    $region29: #{model_forward.1} parent=1 // pred_fallthru
      _
    // Predicated region
    $region30: #{model_forward.1} parent=1 // pred_check
      _
    $region31: #{model_forward.1} parent=1 // pred_check_branch
      %866 = sbr.rel (0) target = $region33
    $region32: #{model_forward.1} parent=1 // pred_region
      %867 = dma.done [#allocation4], 256
    $region33: #{model_forward.1} parent=1 // pred_fallthru
      _
    %868 = vsyncpa [#allocation4], 1

</llo_original>
